<compile_context>
chip_gen: v7x
topology: tpu7x:2x2x1
jax: 0.10.0
libtpu: 0.0.40
codegen_flags: <defaults>
</compile_context>

<pallas_src>
import functools

import jax
import jax.numpy as jnp
from jax.experimental import pallas as pl
from jax.experimental.pallas import tpu as pltpu


F_PAD = 128  # lane-padded feature width used for the hidden layers


# ----------------------------------------------------------------------------
# Fused Pallas kernel: whole network forward on one (TB, input_size) batch tile
# ----------------------------------------------------------------------------
def _fused_mlp_kernel(x_ref, w0_ref, wb_ref, wo_ref, s_ref, o_ref,
                      *, residual_flags):
    """x_ref : (TB, input_size) f32 activations (logical feature width)
       w0_ref: (input_size, F_PAD) bf16 folded first-layer weight
       wb_ref: (n_wb, F_PAD, F_PAD) bf16 folded residual-block weights
       wo_ref: (1, F_PAD) bf16 output-projection weight (as a lane row)
       s_ref : (n_wb + 2, 1, F_PAD) f32 folded shifts; [-1, 0, 0] = out bias
       o_ref : (1, 1, TB) f32 lane-dense output row for this batch tile
    """
    # Initial layer: relu(x @ W'_0 + s_0)   (BN + bias already folded in)
    h = jnp.maximum(
        jnp.dot(x_ref[...].astype(jnp.bfloat16), w0_ref[...],
                preferred_element_type=jnp.float32) + s_ref[0],
        0.0)

    layer = 0
    for add_residual in residual_flags:        # static Python loop (trace time)
        identity = h
        h = jnp.maximum(
            jnp.dot(h.astype(jnp.bfloat16), wb_ref[layer],
                    preferred_element_type=jnp.float32) + s_ref[layer + 1],
            0.0)
        h = jnp.maximum(
            jnp.dot(h.astype(jnp.bfloat16), wb_ref[layer + 1],
                    preferred_element_type=jnp.float32) + s_ref[layer + 2],
            0.0)
        if add_residual:                       # static shape check, no runtime branch
            h = h + identity
        layer += 2

    # Output projection as a transposed-RHS matmul:
    #   (1, F_PAD) . (TB, F_PAD)^T -> (1, TB) lane-dense row (no (TB,128) slab).
    out_row = jax.lax.dot_general(
        wo_ref[...], h.astype(jnp.bfloat16),
        dimension_numbers=(((1,), (1,)), ((), ())),
        preferred_element_type=jnp.float32)
    o_ref[0] = out_row + s_ref[layer + 1, 0, 0]   # scalar output bias


# ----------------------------------------------------------------------------
# Wrapper: batch tiling, single pallas_call
# ----------------------------------------------------------------------------
def _round_up(n, m):
    return (n + m - 1) // m * m


def _choose_tiling(B):
    """Pick (TB, num_tiles, B_pad): big tiles, >=2 grid steps when possible,
    over-padding bounded to <8 rows per tile."""
    B8 = _round_up(B, 8)
    TB_MAX = 1024
    # >=2 grid steps lets the "parallel" axis shard across v7x's 2 TensorCores;
    # the extra ~0.35us per step is negligible on single-TC v5e/v6e.
    num_tiles = max(-(-B8 // TB_MAX), 2 if B8 >= 16 else 1)
    TB = _round_up(-(-B8 // num_tiles), 8)
    return TB, num_tiles, num_tiles * TB


def forward(w0, wb, wo_row, s_stack, residual_flags, x):
    """Fused forward pass.  Returns (B, 1) predictions."""
    B = x.shape[0]
    input_size = w0.shape[0]
    TB, num_tiles, B_pad = _choose_tiling(B)

    # Pad only the batch dimension (features stay at their logical width).
    x_pad = jnp.zeros((B_pad, input_size), jnp.float32)
    x_pad = x_pad.at[:B].set(x.astype(jnp.float32))

    out = pl.pallas_call(
        functools.partial(_fused_mlp_kernel,
                          residual_flags=tuple(residual_flags)),
        out_shape=jax.ShapeDtypeStruct((num_tiles, 1, TB), jnp.float32),
        grid=(num_tiles,),
        in_specs=[
            # activations: tiled over the batch grid axis
            pl.BlockSpec((TB, input_size), lambda i: (i, 0)),
            # weights / shifts: constant index maps -> fetched once, VMEM-resident
            pl.BlockSpec(w0.shape, lambda i: (0, 0)),
            pl.BlockSpec(wb.shape, lambda i: (0, 0, 0)),
            pl.BlockSpec(wo_row.shape, lambda i: (0, 0)),
            pl.BlockSpec(s_stack.shape, lambda i: (0, 0, 0)),
        ],
        out_specs=pl.BlockSpec((1, 1, TB), lambda i: (i, 0, 0)),
        compiler_params=pltpu.CompilerParams(
            dimension_semantics=("parallel",)),   # shards batch across v7x's 2 TCs
    )(x_pad, w0, wb, wo_row, s_stack)

    # (num_tiles, 1, TB) -> (B_pad, 1) -> logical (B, 1) predictions.
    return out.reshape(B_pad, 1)[:B]


# ----------------------------------------------------------------------------
# Parameter construction (deterministic, synthetic)
# ----------------------------------------------------------------------------
def _make_linear_params(key, fan_in, fan_out):
    kw, kb = jax.random.split(key)
    bound = 1.0 / jnp.sqrt(jnp.float32(fan_in))
    w = jax.random.uniform(kw, (fan_in, fan_out), jnp.float32, -bound, bound)
    b = jax.random.uniform(kb, (1, fan_out), jnp.float32, -bound, bound)
    return w, b


def _make_bn_params(key, num_features, eps=1e-5):
    kg, kb, km, kv = jax.random.split(key, 4)
    gamma = 1.0 + 0.1 * jax.random.normal(kg, (1, num_features), jnp.float32)
    beta = 0.1 * jax.random.normal(kb, (1, num_features), jnp.float32)
    running_mean = 0.1 * jax.random.normal(km, (1, num_features), jnp.float32)
    running_var = 1.0 + 0.1 * jax.random.uniform(kv, (1, num_features), jnp.float32)
    scale = gamma / jnp.sqrt(running_var + eps)
    shift = beta - running_mean * scale
    return scale, shift


def init_params(key, input_size, hidden_layers):
    params = {}
    key, k1, k2 = jax.random.split(key, 3)
    w, b = _make_linear_params(k1, input_size, hidden_layers[0])
    s, sh = _make_bn_params(k2, hidden_layers[0])
    params["initial"] = (w, b, s, sh)

    params["blocks"] = []
    for i in range(len(hidden_layers) - 1):
        key, ka, kb_, kc, kd = jax.random.split(key, 5)
        w1, b1 = _make_linear_params(ka, hidden_layers[i], hidden_layers[i + 1])
        s1, sh1 = _make_bn_params(kb_, hidden_layers[i + 1])
        w2, b2 = _make_linear_params(kc, hidden_layers[i + 1], hidden_layers[i + 1])
        s2, sh2 = _make_bn_params(kd, hidden_layers[i + 1])
        params["blocks"].append(((w1, b1, s1, sh1), (w2, b2, s2, sh2)))

    key, ko = jax.random.split(key)
    wo, bo = _make_linear_params(ko, hidden_layers[-1], 1)
    params["out"] = (wo, bo)
    return params


def pack_params(params, input_size, hidden_layers):
    """Fold eval-mode BN + bias into weights, pad hidden dims to F_PAD lanes,
    cast weights to bf16 (MXU-native), keep shifts in f32."""
    assert input_size <= F_PAD and max(hidden_layers) <= F_PAD, (
        "feature widths must be <= F_PAD=128")
    assert len(hidden_layers) >= 2, "need at least one residual block"

    def fold(w, b, scale, shift):
        return w * scale, b * scale + shift           # (in,out), (1,out)

    def pad_w(w_f, in_dim):
        wp = jnp.zeros((in_dim, F_PAD), jnp.float32)
        wp = wp.at[:w_f.shape[0], :w_f.shape[1]].set(w_f)
        return wp.astype(jnp.bfloat16)

    def pad_s(s_f):
        sp = jnp.zeros((1, F_PAD), jnp.float32)
        return sp.at[:, :s_f.shape[1]].set(s_f)

    # Initial layer: weight kept at logical input width (x is not lane-padded).
    w_f, s_f = fold(*params["initial"])
    w0 = pad_w(w_f, input_size)
    shifts = [pad_s(s_f)]

    wb, residual_flags = [], []
    for i, (l1, l2) in enumerate(params["blocks"]):
        w_f, s_f = fold(*l1)
        wb.append(pad_w(w_f, F_PAD)); shifts.append(pad_s(s_f))
        w_f, s_f = fold(*l2)
        wb.append(pad_w(w_f, F_PAD)); shifts.append(pad_s(s_f))
        # residual added only if logical widths match (same semantics as PyTorch)
        residual_flags.append(hidden_layers[i] == hidden_layers[i + 1])

    wo, bo = params["out"]                            # (hidden[-1], 1), (1, 1)
    wo_row = jnp.zeros((1, F_PAD), jnp.float32)
    wo_row = wo_row.at[0, :wo.shape[0]].set(wo[:, 0]).astype(jnp.bfloat16)
    shifts.append(pad_s(bo))                          # out bias at [-1, 0, 0]

    return w0, jnp.stack(wb), wo_row, jnp.stack(shifts), tuple(residual_flags)


# ----------------------------------------------------------------------------
# References for correctness checking
# ----------------------------------------------------------------------------
def forward_ref(params, x):
    """Pure-JAX f32 reference (unfolded, unpadded) — semantics check."""
    def lbr(x, w, b, s, sh):
        return jnp.maximum((x @ w + b) * s + sh, 0.0)

    w, b, s, sh = params["initial"]
    x = lbr(x, w, b, s, sh)
    for (l1, l2) in params["blocks"]:
        identity = x
        x = lbr(x, *l1)
        x = lbr(x, *l2)
        if x.shape == identity.shape:
            x = x + identity
    wo, bo = params["out"]
    return x @ wo + bo


def forward_ref_packed(w0, wb, wo_row, s_stack, residual_flags, x):
    """Pure-JAX reference using the packed bf16 weights (matched precision)."""
    h = jnp.maximum(
        jnp.dot(x.astype(jnp.bfloat16), w0,
                preferred_element_type=jnp.float32) + s_stack[0], 0.0)
    layer = 0
    for add_residual in residual_flags:
        identity = h
        h = jnp.maximum(
            jnp.dot(h.astype(jnp.bfloat16), wb[layer],
                    preferred_element_type=jnp.float32) + s_stack[layer + 1], 0.0)
        h = jnp.maximum(
            jnp.dot(h.astype(jnp.bfloat16), wb[layer + 1],
                    preferred_element_type=jnp.float32) + s_stack[layer + 2], 0.0)
        if add_residual:
            h = h + identity
        layer += 2
    out = jax.lax.dot_general(
        h.astype(jnp.bfloat16), wo_row,
        dimension_numbers=(((1,), (1,)), ((), ())),
        preferred_element_type=jnp.float32)           # (B, 1)
    return out + s_stack[layer + 1, 0, 0]


# ----------------------------------------------------------------------------
if __name__ == "__main__":
    key = jax.random.PRNGKey(0)
    batch = 8
    input_size = 16
    hidden_layers = [32, 32, 32]   # residual connections active (equal widths)
    dropout_rate = 0.1             # eval mode -> no-op

    kp, kx = jax.random.split(key)
    params = init_params(kp, input_size, hidden_layers)
    x = jax.random.normal(kx, (batch, input_size), jnp.float32)

    w0, wb, wo_row, s_stack, res_flags = pack_params(params, input_size, hidden_layers)

    out = forward(w0, wb, wo_row, s_stack, res_flags, x)
    out = jax.block_until_ready(out)
    assert out.shape == (batch, 1), out.shape

    ref_bf16 = forward_ref_packed(w0, wb, wo_row, s_stack, res_flags, x)
    ref_f32 = forward_ref(params, x)
    assert jnp.allclose(out, ref_bf16, atol=2e-3, rtol=2e-3), (
        "mismatch vs matched-precision (bf16) reference")
    assert jnp.allclose(out, ref_f32, atol=1e-1, rtol=1e-1), (
        "mismatch vs pure-JAX f32 reference")

    print("KERNEL_OK")
</pallas_src>

<mosaic_0001>
module attributes {stable_mosaic.version = 11 : i64} {
  func.func @_fused_mlp_kernel(%arg0: i32, %arg1: memref<8x16xf32, #tpu.memory_space<vmem>>, %arg2: memref<16x128xbf16, #tpu.memory_space<vmem>>, %arg3: memref<4x128x128xbf16, #tpu.memory_space<vmem>>, %arg4: memref<1x128xbf16, #tpu.memory_space<vmem>>, %arg5: memref<6x1x128xf32, #tpu.memory_space<vmem>>, %arg6: memref<1x1x8xf32, #tpu.memory_space<vmem>>) attributes {dimension_semantics = [#tpu.dimension_semantics<parallel>], iteration_bounds = array<i64: 1>, scalar_prefetch = 0 : i64, scratch_operands = 0 : i64, tpu.core_type = #tpu.core_type<tc>, window_params = [{transform_indices = @transform_0, window_bounds = array<i64: 8, 16>}, {pipeline_mode = #tpu.pipeline_mode<synchronous>, transform_indices = @transform_1, window_bounds = array<i64: 16, 128>}, {pipeline_mode = #tpu.pipeline_mode<synchronous>, transform_indices = @transform_2, window_bounds = array<i64: 4, 128, 128>}, {pipeline_mode = #tpu.pipeline_mode<synchronous>, transform_indices = @transform_3, window_bounds = array<i64: 1, 128>}, {pipeline_mode = #tpu.pipeline_mode<synchronous>, transform_indices = @transform_4, window_bounds = array<i64: 6, 1, 128>}, {transform_indices = @transform_5, window_bounds = array<i64: 1, 1, 8>}]} {
    %c0 = arith.constant 0 : index
    %c0_0 = arith.constant 0 : index
    %0 = vector.load %arg1[%c0, %c0_0] : memref<8x16xf32, #tpu.memory_space<vmem>>, vector<8x16xf32>
    %1 = arith.truncf %0 : vector<8x16xf32> to vector<8x16xbf16>
    %c0_1 = arith.constant 0 : index
    %c0_2 = arith.constant 0 : index
    %2 = vector.load %arg2[%c0_1, %c0_2] : memref<16x128xbf16, #tpu.memory_space<vmem>>, vector<16x128xbf16>
    %cst = arith.constant dense<0.000000e+00> : vector<8x128xf32>
    %3 = tpu.matmul %1, %2, %cst {dimension_numbers = #tpu.dot_dimension_numbers<[1], [0], [0], [1], [0, 0, 1, 1], [], []>} : vector<8x16xbf16>, vector<16x128xbf16>, vector<8x128xf32> -> vector<8x128xf32>
    %c0_3 = arith.constant 0 : index
    %c0_4 = arith.constant 0 : index
    %c0_5 = arith.constant 0 : index
    %4 = vector.load %arg5[%c0_3, %c0_4, %c0_5] : memref<6x1x128xf32, #tpu.memory_space<vmem>>, vector<1x1x128xf32>
    %5 = vector.shape_cast %4 : vector<1x1x128xf32> to vector<1x128xf32>
    %6 = vector.broadcast %5 : vector<1x128xf32> to vector<8x128xf32>
    %7 = arith.addf %3, %6 : vector<8x128xf32>
    %cst_6 = arith.constant 0.000000e+00 : f32
    %8 = vector.broadcast %cst_6 : f32 to vector<8x128xf32>
    %9 = arith.maximumf %7, %8 : vector<8x128xf32>
    %10 = arith.truncf %9 : vector<8x128xf32> to vector<8x128xbf16>
    %c0_7 = arith.constant 0 : index
    %c0_8 = arith.constant 0 : index
    %c0_9 = arith.constant 0 : index
    %11 = vector.load %arg3[%c0_7, %c0_8, %c0_9] : memref<4x128x128xbf16, #tpu.memory_space<vmem>>, vector<1x128x128xbf16>
    %12 = vector.shape_cast %11 : vector<1x128x128xbf16> to vector<128x128xbf16>
    %cst_10 = arith.constant dense<0.000000e+00> : vector<8x128xf32>
    %13 = tpu.matmul %10, %12, %cst_10 {dimension_numbers = #tpu.dot_dimension_numbers<[1], [0], [0], [1], [0, 0, 1, 1], [], []>} : vector<8x128xbf16>, vector<128x128xbf16>, vector<8x128xf32> -> vector<8x128xf32>
    %c1 = arith.constant 1 : index
    %c0_11 = arith.constant 0 : index
    %c0_12 = arith.constant 0 : index
    %14 = vector.load %arg5[%c1, %c0_11, %c0_12] : memref<6x1x128xf32, #tpu.memory_space<vmem>>, vector<1x1x128xf32>
    %15 = vector.shape_cast %14 : vector<1x1x128xf32> to vector<1x128xf32>
    %16 = vector.broadcast %15 : vector<1x128xf32> to vector<8x128xf32>
    %17 = arith.addf %13, %16 : vector<8x128xf32>
    %cst_13 = arith.constant 0.000000e+00 : f32
    %18 = vector.broadcast %cst_13 : f32 to vector<8x128xf32>
    %19 = arith.maximumf %17, %18 : vector<8x128xf32>
    %20 = arith.truncf %19 : vector<8x128xf32> to vector<8x128xbf16>
    %c1_14 = arith.constant 1 : index
    %c0_15 = arith.constant 0 : index
    %c0_16 = arith.constant 0 : index
    %21 = vector.load %arg3[%c1_14, %c0_15, %c0_16] : memref<4x128x128xbf16, #tpu.memory_space<vmem>>, vector<1x128x128xbf16>
    %22 = vector.shape_cast %21 : vector<1x128x128xbf16> to vector<128x128xbf16>
    %cst_17 = arith.constant dense<0.000000e+00> : vector<8x128xf32>
    %23 = tpu.matmul %20, %22, %cst_17 {dimension_numbers = #tpu.dot_dimension_numbers<[1], [0], [0], [1], [0, 0, 1, 1], [], []>} : vector<8x128xbf16>, vector<128x128xbf16>, vector<8x128xf32> -> vector<8x128xf32>
    %c2 = arith.constant 2 : index
    %c0_18 = arith.constant 0 : index
    %c0_19 = arith.constant 0 : index
    %24 = vector.load %arg5[%c2, %c0_18, %c0_19] : memref<6x1x128xf32, #tpu.memory_space<vmem>>, vector<1x1x128xf32>
    %25 = vector.shape_cast %24 : vector<1x1x128xf32> to vector<1x128xf32>
    %26 = vector.broadcast %25 : vector<1x128xf32> to vector<8x128xf32>
    %27 = arith.addf %23, %26 : vector<8x128xf32>
    %cst_20 = arith.constant 0.000000e+00 : f32
    %28 = vector.broadcast %cst_20 : f32 to vector<8x128xf32>
    %29 = arith.maximumf %27, %28 : vector<8x128xf32>
    %30 = arith.addf %29, %9 : vector<8x128xf32>
    %31 = arith.truncf %30 : vector<8x128xf32> to vector<8x128xbf16>
    %c2_21 = arith.constant 2 : index
    %c0_22 = arith.constant 0 : index
    %c0_23 = arith.constant 0 : index
    %32 = vector.load %arg3[%c2_21, %c0_22, %c0_23] : memref<4x128x128xbf16, #tpu.memory_space<vmem>>, vector<1x128x128xbf16>
    %33 = vector.shape_cast %32 : vector<1x128x128xbf16> to vector<128x128xbf16>
    %cst_24 = arith.constant dense<0.000000e+00> : vector<8x128xf32>
    %34 = tpu.matmul %31, %33, %cst_24 {dimension_numbers = #tpu.dot_dimension_numbers<[1], [0], [0], [1], [0, 0, 1, 1], [], []>} : vector<8x128xbf16>, vector<128x128xbf16>, vector<8x128xf32> -> vector<8x128xf32>
    %c3 = arith.constant 3 : index
    %c0_25 = arith.constant 0 : index
    %c0_26 = arith.constant 0 : index
    %35 = vector.load %arg5[%c3, %c0_25, %c0_26] : memref<6x1x128xf32, #tpu.memory_space<vmem>>, vector<1x1x128xf32>
    %36 = vector.shape_cast %35 : vector<1x1x128xf32> to vector<1x128xf32>
    %37 = vector.broadcast %36 : vector<1x128xf32> to vector<8x128xf32>
    %38 = arith.addf %34, %37 : vector<8x128xf32>
    %cst_27 = arith.constant 0.000000e+00 : f32
    %39 = vector.broadcast %cst_27 : f32 to vector<8x128xf32>
    %40 = arith.maximumf %38, %39 : vector<8x128xf32>
    %41 = arith.truncf %40 : vector<8x128xf32> to vector<8x128xbf16>
    %c3_28 = arith.constant 3 : index
    %c0_29 = arith.constant 0 : index
    %c0_30 = arith.constant 0 : index
    %42 = vector.load %arg3[%c3_28, %c0_29, %c0_30] : memref<4x128x128xbf16, #tpu.memory_space<vmem>>, vector<1x128x128xbf16>
    %43 = vector.shape_cast %42 : vector<1x128x128xbf16> to vector<128x128xbf16>
    %cst_31 = arith.constant dense<0.000000e+00> : vector<8x128xf32>
    %44 = tpu.matmul %41, %43, %cst_31 {dimension_numbers = #tpu.dot_dimension_numbers<[1], [0], [0], [1], [0, 0, 1, 1], [], []>} : vector<8x128xbf16>, vector<128x128xbf16>, vector<8x128xf32> -> vector<8x128xf32>
    %c4 = arith.constant 4 : index
    %c0_32 = arith.constant 0 : index
    %c0_33 = arith.constant 0 : index
    %45 = vector.load %arg5[%c4, %c0_32, %c0_33] : memref<6x1x128xf32, #tpu.memory_space<vmem>>, vector<1x1x128xf32>
    %46 = vector.shape_cast %45 : vector<1x1x128xf32> to vector<1x128xf32>
    %47 = vector.broadcast %46 : vector<1x128xf32> to vector<8x128xf32>
    %48 = arith.addf %44, %47 : vector<8x128xf32>
    %cst_34 = arith.constant 0.000000e+00 : f32
    %49 = vector.broadcast %cst_34 : f32 to vector<8x128xf32>
    %50 = arith.maximumf %48, %49 : vector<8x128xf32>
    %51 = arith.addf %50, %30 : vector<8x128xf32>
    %c0_35 = arith.constant 0 : index
    %c0_36 = arith.constant 0 : index
    %52 = vector.load %arg4[%c0_35, %c0_36] : memref<1x128xbf16, #tpu.memory_space<vmem>>, vector<1x128xbf16>
    %53 = arith.truncf %51 : vector<8x128xf32> to vector<8x128xbf16>
    %cst_37 = arith.constant dense<0.000000e+00> : vector<1x8xf32>
    %54 = tpu.matmul %52, %53, %cst_37 {dimension_numbers = #tpu.dot_dimension_numbers<[1], [1], [0], [0], [0, 0, 1, 0], [], []>} : vector<1x128xbf16>, vector<8x128xbf16>, vector<1x8xf32> -> vector<1x8xf32>
    %c5 = arith.constant 5 : index
    %c0_38 = arith.constant 0 : index
    %c0_39 = arith.constant 0 : index
    %55 = vector.load %arg5[%c5, %c0_38, %c0_39] : memref<6x1x128xf32, #tpu.memory_space<vmem>>, vector<1x1x1xf32>
    %56 = vector.extract %55[0, 0, 0] : f32 from vector<1x1x1xf32>
    %57 = vector.broadcast %56 : f32 to vector<1x8xf32>
    %58 = arith.addf %54, %57 : vector<1x8xf32>
    %c0_40 = arith.constant 0 : index
    %c0_41 = arith.constant 0 : index
    %c0_42 = arith.constant 0 : index
    %59 = vector.load %arg6[%c0_40, %c0_41, %c0_42] : memref<1x1x8xf32, #tpu.memory_space<vmem>>, vector<1x1x8xf32>
    %60 = vector.shape_cast %59 : vector<1x1x8xf32> to vector<1x8xf32>
    %61 = vector.shape_cast %58 : vector<1x8xf32> to vector<1x1x8xf32>
    tpu.vector_store %arg6[%c0_40, %c0_41, %c0_42], %61 {strides = array<i32>} : memref<1x1x8xf32, #tpu.memory_space<vmem>>, vector<1x1x8xf32>,
    return
  }
  func.func @transform_0(%arg0: i32) -> (i32, i32) {
    %c0_i32 = arith.constant 0 : i32
    %c0_i32_0 = arith.constant 0 : i32
    return %arg0, %c0_i32 : i32, i32
  }
  func.func @transform_1(%arg0: i32) -> (i32, i32) {
    %c0_i32 = arith.constant 0 : i32
    %c0_i32_0 = arith.constant 0 : i32
    %c0_i32_1 = arith.constant 0 : i32
    return %c0_i32, %c0_i32_0 : i32, i32
  }
  func.func @transform_2(%arg0: i32) -> (i32, i32, i32) {
    %c0_i32 = arith.constant 0 : i32
    %c0_i32_0 = arith.constant 0 : i32
    %c0_i32_1 = arith.constant 0 : i32
    %c0_i32_2 = arith.constant 0 : i32
    return %c0_i32, %c0_i32_0, %c0_i32_1 : i32, i32, i32
  }
  func.func @transform_3(%arg0: i32) -> (i32, i32) {
    %c0_i32 = arith.constant 0 : i32
    %c0_i32_0 = arith.constant 0 : i32
    %c0_i32_1 = arith.constant 0 : i32
    return %c0_i32, %c0_i32_0 : i32, i32
  }
  func.func @transform_4(%arg0: i32) -> (i32, i32, i32) {
    %c0_i32 = arith.constant 0 : i32
    %c0_i32_0 = arith.constant 0 : i32
    %c0_i32_1 = arith.constant 0 : i32
    %c0_i32_2 = arith.constant 0 : i32
    return %c0_i32, %c0_i32_0, %c0_i32_1 : i32, i32, i32
  }
  func.func @transform_5(%arg0: i32) -> (i32, i32, i32) {
    %c0_i32 = arith.constant 0 : i32
    %c0_i32_0 = arith.constant 0 : i32
    %c0_i32_1 = arith.constant 0 : i32
    return %arg0, %c0_i32, %c0_i32_0 : i32, i32, i32
  }
}

</mosaic_0001>

<llo_original>
// kernel: tpu_custom_call.1
$region0: #{tpu_custom_call.1}
  #allocation0 [shape = 'u32[]', space=smem, size = 0x4, offset = 0x4, fixed_abs, tag = 'smem constant byte address 0x4 - core index']
  #allocation1 [shape = 'u32[144,128]{1,0:T(1,128)}', space=vmem, size = 0x12000, scoped, tag = 'internal scratch']
  %s0 = inlined_call_operand.hbm [shape: f32[8,16], index: 0, kind: input, shape index: {}]
  %s1 = inlined_call_operand.hbm [shape: bf16[16,128], index: 1, kind: input, shape index: {}]
  %s2 = inlined_call_operand.hbm [shape: bf16[4,128,128], index: 2, kind: input, shape index: {}]
  %s3 = inlined_call_operand.vmem [shape: bf16[1,128], index: 3, kind: input, shape index: {}]
  %s4 = inlined_call_operand.vmem [shape: f32[6,1,128], index: 4, kind: input, shape index: {}]
  %s5 = inlined_call_operand.hbm [shape: f32[1,1,8], index: 5, kind: output, shape index: {}]
  %s6 = sld [smem:[#allocation0]]
  $region42: #{tpu_custom_call.1} parent=0
    _
  %s8 = ssub.s32 1, %s6
  %s9 = scalar_select 0, %s8, %s6
  $region1: #{tpu_custom_call.1} parent=0
    #allocation2 [shape = 'u8[4096]{0}', space=vmem, size = 0x1000, scoped, tag = 'input window, operand 0, single buffered']
    #allocation3 [shape = 's32[1]{0}', space=sflag, size = 0x4, scoped, tag = 'scoped memory for tpu_custom_call.1']
    #allocation4 [shape = 's32[1]{0}', space=sflag, size = 0x4, scoped, tag = 'scoped memory for tpu_custom_call.1']
    #allocation5 [shape = 'u8[4096]{0}', space=vmem, size = 0x1000, scoped, tag = 'input window, operand 1, single buffered']
    #allocation6 [shape = 's32[1]{0}', space=sflag, size = 0x4, scoped, tag = 'scoped memory for tpu_custom_call.1']
    #allocation7 [shape = 'u8[131072]{0}', space=vmem, size = 0x20000, scoped, tag = 'input window, operand 2, single buffered']
    #allocation8 [shape = 'u8[512]{0}', space=vmem, size = 0x400, scoped, tag = 'output window, operand 0, single buffered']
    %10 = vsyncpa [#allocation3], 0
    %11 = vsyncpa [#allocation6], 0
    %12 = vsyncpa [#allocation4], 0
    // Predicated region
    $region2: #{tpu_custom_call.1} parent=1 // pred_check
      _
    $region3: #{tpu_custom_call.1} parent=1 // pred_check_branch
      %14 = sbr.rel (0) target = $region5
    $region4: #{tpu_custom_call.1} parent=1 // pred_region
      %s16 = ssub.s32 128, 128
      %17 = vsyncadd [#allocation3], %s16
      %s19 = sshll.u32 [#allocation2], 4
      %s20 = int_to_ptr.vmem [resolvable:$true] %s19
      %22 = dma.hbm_to_vmem [thread:$0]  %s0, 128, %s20, [#allocation3]
    $region5: #{tpu_custom_call.1} parent=1 // pred_fallthru
      _
    // Predicated region
    $region6: #{tpu_custom_call.1} parent=1 // pred_check
      _
    $region7: #{tpu_custom_call.1} parent=1 // pred_check_branch
      %24 = sbr.rel (0) target = $region9
    $region8: #{tpu_custom_call.1} parent=1 // pred_region
      %s26 = ssub.s32 128, 128
      %27 = vsyncadd [#allocation6], %s26
      %s28 = sshll.u32 [#allocation5], 4
      %s29 = int_to_ptr.vmem [resolvable:$true] %s28
      %34 = dma.hbm_to_vmem [thread:$0]  %s1, 128, %s29, [#allocation6], 64, 64, 4
    $region9: #{tpu_custom_call.1} parent=1 // pred_fallthru
      _
    // Predicated region
    $region10: #{tpu_custom_call.1} parent=1 // pred_check
      _
    $region11: #{tpu_custom_call.1} parent=1 // pred_check_branch
      %36 = sbr.rel (0) target = $region13
    $region12: #{tpu_custom_call.1} parent=1 // pred_region
      %s38 = ssub.s32 4096, 4096
      %39 = vsyncadd [#allocation6], %s38
      %s40 = sshll.u32 [#allocation7], 4
      %s41 = int_to_ptr.vmem [resolvable:$true] %s40
      %46 = dma.hbm_to_vmem [thread:$0]  %s2, 4096, %s41, [#allocation6], 64, 64, 4
    $region13: #{tpu_custom_call.1} parent=1 // pred_fallthru
      _
    // Predicated region
    $region14: #{tpu_custom_call.1} parent=1 // pred_check
      _
    $region15: #{tpu_custom_call.1} parent=1 // pred_check_branch
      %48 = sbr.rel (0) target = $region17
    $region16: #{tpu_custom_call.1} parent=1 // pred_region
      _
    $region17: #{tpu_custom_call.1} parent=1 // pred_fallthru
      _
    // Predicated region
    $region18: #{tpu_custom_call.1} parent=1 // pred_check
      _
    $region19: #{tpu_custom_call.1} parent=1 // pred_check_branch
      %50 = sbr.rel (0) target = $region21
    $region20: #{tpu_custom_call.1} parent=1 // pred_region
      _
    $region21: #{tpu_custom_call.1} parent=1 // pred_fallthru
      _
    // Predicated region
    $region22: #{tpu_custom_call.1} parent=1 // pred_check
      _
    $region23: #{tpu_custom_call.1} parent=1 // pred_check_branch
      %52 = sbr.rel (0) target = $region25
    $region24: #{tpu_custom_call.1} parent=1 // pred_region
      %53 = dma.done [#allocation3], 128
    $region25: #{tpu_custom_call.1} parent=1 // pred_fallthru
      _
    // Predicated region
    $region26: #{tpu_custom_call.1} parent=1 // pred_check
      _
    $region27: #{tpu_custom_call.1} parent=1 // pred_check_branch
      %55 = sbr.rel (0) target = $region29
    $region28: #{tpu_custom_call.1} parent=1 // pred_region
      %56 = dma.done [#allocation6], 128
    $region29: #{tpu_custom_call.1} parent=1 // pred_fallthru
      _
    // Predicated region
    $region30: #{tpu_custom_call.1} parent=1 // pred_check
      _
    $region31: #{tpu_custom_call.1} parent=1 // pred_check_branch
      %58 = sbr.rel (0) target = $region33
    $region32: #{tpu_custom_call.1} parent=1 // pred_region
      %59 = dma.done [#allocation6], 4096
    $region33: #{tpu_custom_call.1} parent=1 // pred_fallthru
      _
    %v61 = vld [vmem:[#allocation2] sm:$0xff]
    %v62 = vpack.c.bf16 %v61, %v61
    %v63 = vld [vmem:[#allocation5] sm:$0xf]
    %v64 = vld [vmem:[#allocation5 + $0x4] sm:$0xf]
    %v65 = vld [vmem:[%s4] sm:$0x1]
    %v67 = vlaneseq
    %v68 = vshrl.u32 %v67, 7
    %v69 = vsub.s32 0, %v68
    %v70 = vrot.slane %v65, %v69
    %v74 = vunpack.c.l.b16 %v63
    %v75 = vunpack.c.l.b16 %v64
    %v76 = vpack.c.b16 %v75, %v74
    %vm78 = vcmask 130048
    %v80 = vsel %vm78, %v62, 0
    %82 = vmatprep.subr.bf16.mxu0 0
    %83 = vmatpush1.bf16.msra.mxu0 %v76
    %84 = vmatprep.subr.bf16.mxu0 0
    %85 = vmatpush1.bf16.msra.mxu0 0
    %86 = vmatprep.subr.bf16.mxu0 0
    %87 = vmatpush1.bf16.msra.mxu0 0
    %88 = vmatprep.subr.bf16.mxu0 0
    %89 = vmatpush1.bf16.msra.mxu0 0
    %90 = vmatprep.subr.bf16.mxu0 0
    %91 = vmatpush1.bf16.msra.mxu0 0
    %92 = vmatprep.subr.bf16.mxu0 0
    %93 = vmatpush1.bf16.msra.mxu0 0
    %94 = vmatprep.subr.bf16.mxu0 0
    %95 = vmatpush1.bf16.msra.mxu0 0
    %96 = vmatprep.subr.bf16.mxu0 0
    %97 = vmatpush1.bf16.msra.mxu0 0
    %98 = vmatprep.subr.bf16.mxu0 0
    %99 = vmatpush1.bf16.msra.mxu0 0
    %100 = vmatprep.subr.bf16.mxu0 0
    %101 = vmatpush1.bf16.msra.mxu0 0
    %102 = vmatprep.subr.bf16.mxu0 0
    %103 = vmatpush1.bf16.msra.mxu0 0
    %104 = vmatprep.subr.bf16.mxu0 0
    %105 = vmatpush1.bf16.msra.mxu0 0
    %106 = vmatprep.subr.bf16.mxu0 0
    %107 = vmatpush1.bf16.msra.mxu0 0
    %108 = vmatprep.subr.bf16.mxu0 0
    %109 = vmatpush1.bf16.msra.mxu0 0
    %110 = vmatprep.subr.bf16.mxu0 0
    %111 = vmatpush1.bf16.msra.mxu0 0
    %112 = vmatprep.subr.bf16.mxu0 0
    %113 = vmatpush1.bf16.msra.mxu0 0
    %114 = vmatprep.mubr.bf16.mxu0 0
    %115 = vmatmul.mubr.bf16.gmra.mrb[0].mxu0 %v80
    %v116 = vpop.f32.mrb[0].mxu0
    %v117 = vadd.f32 %v70, %v116
    %v118 = vpop.f32.mrb[0].mxu0
    %v119 = vpop.f32.mrb[0].mxu0
    %v120 = vpop.f32.mrb[0].mxu0
    %121 = vdwg.mxu0
    %v122 = vmax.f32 %v117, 0.0
    %v123 = vpack.c.bf16 %v122, %v122
    %v124 = vld [vmem:[#allocation7] sm:$0xf]
    %v125 = vld [vmem:[#allocation7 + $0x4] sm:$0xf]
    %v126 = vld [vmem:[#allocation7 + $0x8] sm:$0xf]
    %v127 = vld [vmem:[#allocation7 + $0xc] sm:$0xf]
    %v128 = vld [vmem:[#allocation7 + $0x10] sm:$0xf]
    %v129 = vld [vmem:[#allocation7 + $0x14] sm:$0xf]
    %v130 = vld [vmem:[#allocation7 + $0x18] sm:$0xf]
    %v131 = vld [vmem:[#allocation7 + $0x1c] sm:$0xf]
    %v132 = vld [vmem:[#allocation7 + $0x20] sm:$0xf]
    %v133 = vld [vmem:[#allocation7 + $0x24] sm:$0xf]
    %v134 = vld [vmem:[#allocation7 + $0x28] sm:$0xf]
    %v135 = vld [vmem:[#allocation7 + $0x2c] sm:$0xf]
    %v136 = vld [vmem:[#allocation7 + $0x30] sm:$0xf]
    %v137 = vld [vmem:[#allocation7 + $0x34] sm:$0xf]
    %v138 = vld [vmem:[#allocation7 + $0x38] sm:$0xf]
    %v139 = vld [vmem:[#allocation7 + $0x3c] sm:$0xf]
    %s140 = scalar_lea.vmem %s4, 1
    %v141 = vld [vmem:[%s140] sm:$0x1]
    %v143 = vlaneseq
    %v144 = vshrl.u32 %v143, 7
    %v145 = vsub.s32 0, %v144
    %v146 = vrot.slane %v141, %v145
    %v164 = vunpack.c.l.b16 %v124
    %v165 = vunpack.c.l.b16 %v125
    %v166 = vunpack.c.l.b16 %v126
    %v167 = vunpack.c.l.b16 %v127
    %v168 = vunpack.c.l.b16 %v128
    %v169 = vunpack.c.l.b16 %v129
    %v170 = vunpack.c.l.b16 %v130
    %v171 = vunpack.c.l.b16 %v131
    %v172 = vunpack.c.l.b16 %v132
    %v173 = vunpack.c.l.b16 %v133
    %v174 = vunpack.c.l.b16 %v134
    %v175 = vunpack.c.l.b16 %v135
    %v176 = vunpack.c.l.b16 %v136
    %v177 = vunpack.c.l.b16 %v137
    %v178 = vunpack.c.l.b16 %v138
    %v179 = vunpack.c.l.b16 %v139
    %v180 = vpack.c.b16 %v165, %v164
    %v181 = vpack.c.b16 %v167, %v166
    %v182 = vpack.c.b16 %v169, %v168
    %v183 = vpack.c.b16 %v171, %v170
    %v184 = vpack.c.b16 %v173, %v172
    %v185 = vpack.c.b16 %v175, %v174
    %v186 = vpack.c.b16 %v177, %v176
    %v187 = vpack.c.b16 %v179, %v178
    %196 = vmatprep.subr.bf16.mxu0 0
    %197 = vmatpush1.bf16.msra.mxu0 %v180
    %198 = vmatprep.subr.bf16.mxu0 0
    %199 = vmatpush1.bf16.msra.mxu0 %v181
    %200 = vmatprep.subr.bf16.mxu0 0
    %201 = vmatpush1.bf16.msra.mxu0 %v182
    %202 = vmatprep.subr.bf16.mxu0 0
    %203 = vmatpush1.bf16.msra.mxu0 %v183
    %204 = vmatprep.subr.bf16.mxu0 0
    %205 = vmatpush1.bf16.msra.mxu0 %v184
    %206 = vmatprep.subr.bf16.mxu0 0
    %207 = vmatpush1.bf16.msra.mxu0 %v185
    %208 = vmatprep.subr.bf16.mxu0 0
    %209 = vmatpush1.bf16.msra.mxu0 %v186
    %210 = vmatprep.subr.bf16.mxu0 0
    %211 = vmatpush1.bf16.msra.mxu0 %v187
    %212 = vmatprep.subr.bf16.mxu0 0
    %213 = vmatpush1.bf16.msra.mxu0 0
    %214 = vmatprep.subr.bf16.mxu0 0
    %215 = vmatpush1.bf16.msra.mxu0 0
    %216 = vmatprep.subr.bf16.mxu0 0
    %217 = vmatpush1.bf16.msra.mxu0 0
    %218 = vmatprep.subr.bf16.mxu0 0
    %219 = vmatpush1.bf16.msra.mxu0 0
    %220 = vmatprep.subr.bf16.mxu0 0
    %221 = vmatpush1.bf16.msra.mxu0 0
    %222 = vmatprep.subr.bf16.mxu0 0
    %223 = vmatpush1.bf16.msra.mxu0 0
    %224 = vmatprep.subr.bf16.mxu0 0
    %225 = vmatpush1.bf16.msra.mxu0 0
    %226 = vmatprep.subr.bf16.mxu0 0
    %227 = vmatpush1.bf16.msra.mxu0 0
    %228 = vmatprep.mubr.bf16.mxu0 0
    %229 = vmatmul.mubr.bf16.gmra.mrb[0].mxu0 %v123
    %v230 = vpop.f32.mrb[0].mxu0
    %v231 = vadd.f32 %v146, %v230
    %v232 = vpop.f32.mrb[0].mxu0
    %v233 = vpop.f32.mrb[0].mxu0
    %v234 = vpop.f32.mrb[0].mxu0
    %235 = vdwg.mxu0
    %v236 = vmax.f32 %v231, 0.0
    %v237 = vpack.c.bf16 %v236, %v236
    %s238 = scalar_lea.vmem [#allocation7], 64
    %v239 = vld [vmem:[%s238] sm:$0xf]
    %v240 = vld [vmem:[%s238 + $0x4] sm:$0xf]
    %v241 = vld [vmem:[%s238 + $0x8] sm:$0xf]
    %v242 = vld [vmem:[%s238 + $0xc] sm:$0xf]
    %v243 = vld [vmem:[%s238 + $0x10] sm:$0xf]
    %v244 = vld [vmem:[%s238 + $0x14] sm:$0xf]
    %v245 = vld [vmem:[%s238 + $0x18] sm:$0xf]
    %v246 = vld [vmem:[%s238 + $0x1c] sm:$0xf]
    %v247 = vld [vmem:[%s238 + $0x20] sm:$0xf]
    %v248 = vld [vmem:[%s238 + $0x24] sm:$0xf]
    %v249 = vld [vmem:[%s238 + $0x28] sm:$0xf]
    %v250 = vld [vmem:[%s238 + $0x2c] sm:$0xf]
    %v251 = vld [vmem:[%s238 + $0x30] sm:$0xf]
    %v252 = vld [vmem:[%s238 + $0x34] sm:$0xf]
    %v253 = vld [vmem:[%s238 + $0x38] sm:$0xf]
    %v254 = vld [vmem:[%s238 + $0x3c] sm:$0xf]
    %s255 = scalar_lea.vmem %s4, 2
    %v256 = vld [vmem:[%s255] sm:$0x1]
    %v258 = vlaneseq
    %v259 = vshrl.u32 %v258, 7
    %v260 = vsub.s32 0, %v259
    %v261 = vrot.slane %v256, %v260
    %v279 = vunpack.c.l.b16 %v239
    %v280 = vunpack.c.l.b16 %v240
    %v281 = vunpack.c.l.b16 %v241
    %v282 = vunpack.c.l.b16 %v242
    %v283 = vunpack.c.l.b16 %v243
    %v284 = vunpack.c.l.b16 %v244
    %v285 = vunpack.c.l.b16 %v245
    %v286 = vunpack.c.l.b16 %v246
    %v287 = vunpack.c.l.b16 %v247
    %v288 = vunpack.c.l.b16 %v248
    %v289 = vunpack.c.l.b16 %v249
    %v290 = vunpack.c.l.b16 %v250
    %v291 = vunpack.c.l.b16 %v251
    %v292 = vunpack.c.l.b16 %v252
    %v293 = vunpack.c.l.b16 %v253
    %v294 = vunpack.c.l.b16 %v254
    %v295 = vpack.c.b16 %v280, %v279
    %v296 = vpack.c.b16 %v282, %v281
    %v297 = vpack.c.b16 %v284, %v283
    %v298 = vpack.c.b16 %v286, %v285
    %v299 = vpack.c.b16 %v288, %v287
    %v300 = vpack.c.b16 %v290, %v289
    %v301 = vpack.c.b16 %v292, %v291
    %v302 = vpack.c.b16 %v294, %v293
    %311 = vmatprep.subr.bf16.mxu0 0
    %312 = vmatpush1.bf16.msra.mxu0 %v295
    %313 = vmatprep.subr.bf16.mxu0 0
    %314 = vmatpush1.bf16.msra.mxu0 %v296
    %315 = vmatprep.subr.bf16.mxu0 0
    %316 = vmatpush1.bf16.msra.mxu0 %v297
    %317 = vmatprep.subr.bf16.mxu0 0
    %318 = vmatpush1.bf16.msra.mxu0 %v298
    %319 = vmatprep.subr.bf16.mxu0 0
    %320 = vmatpush1.bf16.msra.mxu0 %v299
    %321 = vmatprep.subr.bf16.mxu0 0
    %322 = vmatpush1.bf16.msra.mxu0 %v300
    %323 = vmatprep.subr.bf16.mxu0 0
    %324 = vmatpush1.bf16.msra.mxu0 %v301
    %325 = vmatprep.subr.bf16.mxu0 0
    %326 = vmatpush1.bf16.msra.mxu0 %v302
    %327 = vmatprep.subr.bf16.mxu0 0
    %328 = vmatpush1.bf16.msra.mxu0 0
    %329 = vmatprep.subr.bf16.mxu0 0
    %330 = vmatpush1.bf16.msra.mxu0 0
    %331 = vmatprep.subr.bf16.mxu0 0
    %332 = vmatpush1.bf16.msra.mxu0 0
    %333 = vmatprep.subr.bf16.mxu0 0
    %334 = vmatpush1.bf16.msra.mxu0 0
    %335 = vmatprep.subr.bf16.mxu0 0
    %336 = vmatpush1.bf16.msra.mxu0 0
    %337 = vmatprep.subr.bf16.mxu0 0
    %338 = vmatpush1.bf16.msra.mxu0 0
    %339 = vmatprep.subr.bf16.mxu0 0
    %340 = vmatpush1.bf16.msra.mxu0 0
    %341 = vmatprep.subr.bf16.mxu0 0
    %342 = vmatpush1.bf16.msra.mxu0 0
    %343 = vmatprep.mubr.bf16.mxu0 0
    %344 = vmatmul.mubr.bf16.gmra.mrb[0].mxu0 %v237
    %v345 = vpop.f32.mrb[0].mxu0
    %v346 = vadd.f32 %v261, %v345
    %v347 = vpop.f32.mrb[0].mxu0
    %v348 = vpop.f32.mrb[0].mxu0
    %v349 = vpop.f32.mrb[0].mxu0
    %350 = vdwg.mxu0
    %v351 = vmax.f32 %v346, 0.0
    %v352 = vadd.f32 %v351, %v122
    %v353 = vpack.c.bf16 %v352, %v352
    %s354 = scalar_lea.vmem [#allocation7], 128
    %v355 = vld [vmem:[%s354] sm:$0xf]
    %v356 = vld [vmem:[%s354 + $0x4] sm:$0xf]
    %v357 = vld [vmem:[%s354 + $0x8] sm:$0xf]
    %v358 = vld [vmem:[%s354 + $0xc] sm:$0xf]
    %v359 = vld [vmem:[%s354 + $0x10] sm:$0xf]
    %v360 = vld [vmem:[%s354 + $0x14] sm:$0xf]
    %v361 = vld [vmem:[%s354 + $0x18] sm:$0xf]
    %v362 = vld [vmem:[%s354 + $0x1c] sm:$0xf]
    %v363 = vld [vmem:[%s354 + $0x20] sm:$0xf]
    %v364 = vld [vmem:[%s354 + $0x24] sm:$0xf]
    %v365 = vld [vmem:[%s354 + $0x28] sm:$0xf]
    %v366 = vld [vmem:[%s354 + $0x2c] sm:$0xf]
    %v367 = vld [vmem:[%s354 + $0x30] sm:$0xf]
    %v368 = vld [vmem:[%s354 + $0x34] sm:$0xf]
    %v369 = vld [vmem:[%s354 + $0x38] sm:$0xf]
    %v370 = vld [vmem:[%s354 + $0x3c] sm:$0xf]
    %s371 = scalar_lea.vmem %s4, 3
    %v372 = vld [vmem:[%s371] sm:$0x1]
    %v374 = vlaneseq
    %v375 = vshrl.u32 %v374, 7
    %v376 = vsub.s32 0, %v375
    %v377 = vrot.slane %v372, %v376
    %v395 = vunpack.c.l.b16 %v355
    %v396 = vunpack.c.l.b16 %v356
    %v397 = vunpack.c.l.b16 %v357
    %v398 = vunpack.c.l.b16 %v358
    %v399 = vunpack.c.l.b16 %v359
    %v400 = vunpack.c.l.b16 %v360
    %v401 = vunpack.c.l.b16 %v361
    %v402 = vunpack.c.l.b16 %v362
    %v403 = vunpack.c.l.b16 %v363
    %v404 = vunpack.c.l.b16 %v364
    %v405 = vunpack.c.l.b16 %v365
    %v406 = vunpack.c.l.b16 %v366
    %v407 = vunpack.c.l.b16 %v367
    %v408 = vunpack.c.l.b16 %v368
    %v409 = vunpack.c.l.b16 %v369
    %v410 = vunpack.c.l.b16 %v370
    %v411 = vpack.c.b16 %v396, %v395
    %v412 = vpack.c.b16 %v398, %v397
    %v413 = vpack.c.b16 %v400, %v399
    %v414 = vpack.c.b16 %v402, %v401
    %v415 = vpack.c.b16 %v404, %v403
    %v416 = vpack.c.b16 %v406, %v405
    %v417 = vpack.c.b16 %v408, %v407
    %v418 = vpack.c.b16 %v410, %v409
    %427 = vmatprep.subr.bf16.mxu0 0
    %428 = vmatpush1.bf16.msra.mxu0 %v411
    %429 = vmatprep.subr.bf16.mxu0 0
    %430 = vmatpush1.bf16.msra.mxu0 %v412
    %431 = vmatprep.subr.bf16.mxu0 0
    %432 = vmatpush1.bf16.msra.mxu0 %v413
    %433 = vmatprep.subr.bf16.mxu0 0
    %434 = vmatpush1.bf16.msra.mxu0 %v414
    %435 = vmatprep.subr.bf16.mxu0 0
    %436 = vmatpush1.bf16.msra.mxu0 %v415
    %437 = vmatprep.subr.bf16.mxu0 0
    %438 = vmatpush1.bf16.msra.mxu0 %v416
    %439 = vmatprep.subr.bf16.mxu0 0
    %440 = vmatpush1.bf16.msra.mxu0 %v417
    %441 = vmatprep.subr.bf16.mxu0 0
    %442 = vmatpush1.bf16.msra.mxu0 %v418
    %443 = vmatprep.subr.bf16.mxu0 0
    %444 = vmatpush1.bf16.msra.mxu0 0
    %445 = vmatprep.subr.bf16.mxu0 0
    %446 = vmatpush1.bf16.msra.mxu0 0
    %447 = vmatprep.subr.bf16.mxu0 0
    %448 = vmatpush1.bf16.msra.mxu0 0
    %449 = vmatprep.subr.bf16.mxu0 0
    %450 = vmatpush1.bf16.msra.mxu0 0
    %451 = vmatprep.subr.bf16.mxu0 0
    %452 = vmatpush1.bf16.msra.mxu0 0
    %453 = vmatprep.subr.bf16.mxu0 0
    %454 = vmatpush1.bf16.msra.mxu0 0
    %455 = vmatprep.subr.bf16.mxu0 0
    %456 = vmatpush1.bf16.msra.mxu0 0
    %457 = vmatprep.subr.bf16.mxu0 0
    %458 = vmatpush1.bf16.msra.mxu0 0
    %459 = vmatprep.mubr.bf16.mxu0 0
    %460 = vmatmul.mubr.bf16.gmra.mrb[0].mxu0 %v353
    %v461 = vpop.f32.mrb[0].mxu0
    %v462 = vadd.f32 %v377, %v461
    %v463 = vpop.f32.mrb[0].mxu0
    %v464 = vpop.f32.mrb[0].mxu0
    %v465 = vpop.f32.mrb[0].mxu0
    %466 = vdwg.mxu0
    %v467 = vmax.f32 %v462, 0.0
    %v468 = vpack.c.bf16 %v467, %v467
    %s469 = scalar_lea.vmem [#allocation7], 192
    %v470 = vld [vmem:[%s469] sm:$0xf]
    %v471 = vld [vmem:[%s469 + $0x4] sm:$0xf]
    %v472 = vld [vmem:[%s469 + $0x8] sm:$0xf]
    %v473 = vld [vmem:[%s469 + $0xc] sm:$0xf]
    %v474 = vld [vmem:[%s469 + $0x10] sm:$0xf]
    %v475 = vld [vmem:[%s469 + $0x14] sm:$0xf]
    %v476 = vld [vmem:[%s469 + $0x18] sm:$0xf]
    %v477 = vld [vmem:[%s469 + $0x1c] sm:$0xf]
    %v478 = vld [vmem:[%s469 + $0x20] sm:$0xf]
    %v479 = vld [vmem:[%s469 + $0x24] sm:$0xf]
    %v480 = vld [vmem:[%s469 + $0x28] sm:$0xf]
    %v481 = vld [vmem:[%s469 + $0x2c] sm:$0xf]
    %v482 = vld [vmem:[%s469 + $0x30] sm:$0xf]
    %v483 = vld [vmem:[%s469 + $0x34] sm:$0xf]
    %v484 = vld [vmem:[%s469 + $0x38] sm:$0xf]
    %v485 = vld [vmem:[%s469 + $0x3c] sm:$0xf]
    %s486 = scalar_lea.vmem %s4, 4
    %v487 = vld [vmem:[%s486] sm:$0x1]
    %v489 = vlaneseq
    %v490 = vshrl.u32 %v489, 7
    %v491 = vsub.s32 0, %v490
    %v492 = vrot.slane %v487, %v491
    %v510 = vunpack.c.l.b16 %v470
    %v511 = vunpack.c.l.b16 %v471
    %v512 = vunpack.c.l.b16 %v472
    %v513 = vunpack.c.l.b16 %v473
    %v514 = vunpack.c.l.b16 %v474
    %v515 = vunpack.c.l.b16 %v475
    %v516 = vunpack.c.l.b16 %v476
    %v517 = vunpack.c.l.b16 %v477
    %v518 = vunpack.c.l.b16 %v478
    %v519 = vunpack.c.l.b16 %v479
    %v520 = vunpack.c.l.b16 %v480
    %v521 = vunpack.c.l.b16 %v481
    %v522 = vunpack.c.l.b16 %v482
    %v523 = vunpack.c.l.b16 %v483
    %v524 = vunpack.c.l.b16 %v484
    %v525 = vunpack.c.l.b16 %v485
    %v526 = vpack.c.b16 %v511, %v510
    %v527 = vpack.c.b16 %v513, %v512
    %v528 = vpack.c.b16 %v515, %v514
    %v529 = vpack.c.b16 %v517, %v516
    %v530 = vpack.c.b16 %v519, %v518
    %v531 = vpack.c.b16 %v521, %v520
    %v532 = vpack.c.b16 %v523, %v522
    %v533 = vpack.c.b16 %v525, %v524
    %542 = vmatprep.subr.bf16.mxu0 0
    %543 = vmatpush1.bf16.msra.mxu0 %v526
    %544 = vmatprep.subr.bf16.mxu0 0
    %545 = vmatpush1.bf16.msra.mxu0 %v527
    %546 = vmatprep.subr.bf16.mxu0 0
    %547 = vmatpush1.bf16.msra.mxu0 %v528
    %548 = vmatprep.subr.bf16.mxu0 0
    %549 = vmatpush1.bf16.msra.mxu0 %v529
    %550 = vmatprep.subr.bf16.mxu0 0
    %551 = vmatpush1.bf16.msra.mxu0 %v530
    %552 = vmatprep.subr.bf16.mxu0 0
    %553 = vmatpush1.bf16.msra.mxu0 %v531
    %554 = vmatprep.subr.bf16.mxu0 0
    %555 = vmatpush1.bf16.msra.mxu0 %v532
    %556 = vmatprep.subr.bf16.mxu0 0
    %557 = vmatpush1.bf16.msra.mxu0 %v533
    %558 = vmatprep.subr.bf16.mxu0 0
    %559 = vmatpush1.bf16.msra.mxu0 0
    %560 = vmatprep.subr.bf16.mxu0 0
    %561 = vmatpush1.bf16.msra.mxu0 0
    %562 = vmatprep.subr.bf16.mxu0 0
    %563 = vmatpush1.bf16.msra.mxu0 0
    %564 = vmatprep.subr.bf16.mxu0 0
    %565 = vmatpush1.bf16.msra.mxu0 0
    %566 = vmatprep.subr.bf16.mxu0 0
    %567 = vmatpush1.bf16.msra.mxu0 0
    %568 = vmatprep.subr.bf16.mxu0 0
    %569 = vmatpush1.bf16.msra.mxu0 0
    %570 = vmatprep.subr.bf16.mxu0 0
    %571 = vmatpush1.bf16.msra.mxu0 0
    %572 = vmatprep.subr.bf16.mxu0 0
    %573 = vmatpush1.bf16.msra.mxu0 0
    %574 = vmatprep.mubr.bf16.mxu0 0
    %575 = vmatmul.mubr.bf16.gmra.mrb[0].mxu0 %v468
    %v576 = vpop.f32.mrb[0].mxu0
    %v577 = vadd.f32 %v492, %v576
    %v578 = vpop.f32.mrb[0].mxu0
    %v579 = vpop.f32.mrb[0].mxu0
    %v580 = vpop.f32.mrb[0].mxu0
    %581 = vdwg.mxu0
    %v582 = vmax.f32 %v577, 0.0
    %v583 = vadd.f32 %v582, %v352
    %v584 = vld [vmem:[%s3] sm:$0x1]
    %v585 = vpack.c.bf16 %v583, %v583
    %s586 = scalar_lea.vmem %s4, 5
    %v587 = vld [vmem:[%s586] sm:$0x1]
    %s588 = vtos %v587
    %v589 = vstv %s588
    %590 = vmatprep.subr.bf16.mxu0 0
    %591 = vmatpush1.bf16.xpose.msra.mxu0 %v585
    %592 = vmatprep.subr.bf16.mxu0 0
    %593 = vmatpush1.bf16.xpose.msra.mxu0 0
    %594 = vmatprep.subr.bf16.mxu0 0
    %595 = vmatpush1.bf16.xpose.msra.mxu0 0
    %596 = vmatprep.subr.bf16.mxu0 0
    %597 = vmatpush1.bf16.xpose.msra.mxu0 0
    %598 = vmatprep.subr.bf16.mxu0 0
    %599 = vmatpush1.bf16.xpose.msra.mxu0 0
    %600 = vmatprep.subr.bf16.mxu0 0
    %601 = vmatpush1.bf16.xpose.msra.mxu0 0
    %602 = vmatprep.subr.bf16.mxu0 0
    %603 = vmatpush1.bf16.xpose.msra.mxu0 0
    %604 = vmatprep.subr.bf16.mxu0 0
    %605 = vmatpush1.bf16.xpose.msra.mxu0 0
    %606 = vmatprep.subr.bf16.mxu0 0
    %607 = vmatpush1.bf16.xpose.msra.mxu0 0
    %608 = vmatprep.subr.bf16.mxu0 0
    %609 = vmatpush1.bf16.xpose.msra.mxu0 0
    %610 = vmatprep.subr.bf16.mxu0 0
    %611 = vmatpush1.bf16.xpose.msra.mxu0 0
    %612 = vmatprep.subr.bf16.mxu0 0
    %613 = vmatpush1.bf16.xpose.msra.mxu0 0
    %614 = vmatprep.subr.bf16.mxu0 0
    %615 = vmatpush1.bf16.xpose.msra.mxu0 0
    %616 = vmatprep.subr.bf16.mxu0 0
    %617 = vmatpush1.bf16.xpose.msra.mxu0 0
    %618 = vmatprep.subr.bf16.mxu0 0
    %619 = vmatpush1.bf16.xpose.msra.mxu0 0
    %620 = vmatprep.subr.bf16.mxu0 0
    %621 = vmatpush1.bf16.xpose.msra.mxu0 0
    %622 = vmatprep.mubr.bf16.mxu0 0
    %623 = vmatmul.mubr.bf16.gmra.mrb[0].mxu0 %v584
    %v624 = vpop.f32.mrb[0].mxu0
    %v625 = vadd.f32 %v589, %v624
    %v626 = vpop.f32.mrb[0].mxu0
    %v627 = vpop.f32.mrb[0].mxu0
    %v628 = vpop.f32.mrb[0].mxu0
    %629 = vdwg.mxu0
    %vm630 = vcmask 57344
    %631 = vst.msk [vmem:[#allocation8] sm:$0x1] %vm630, %v625
    // Predicated region
    $region34: #{tpu_custom_call.1} parent=1 // pred_check
      _
    $region35: #{tpu_custom_call.1} parent=1 // pred_check_branch
      %633 = sbr.rel (0) target = $region37
    $region36: #{tpu_custom_call.1} parent=1 // pred_region
      %s635 = ssub.s32 16, 16
      %636 = vsyncadd [#allocation4], %s635
      %s638 = sshll.u32 [#allocation8], 4
      %s639 = int_to_ptr.vmem [resolvable:$true] %s638
      %641 = dma.vmem_to_hbm [thread:$0]  %s639, 16, %s5, [#allocation4]
    $region37: #{tpu_custom_call.1} parent=1 // pred_fallthru
      _
    // Predicated region
    $region38: #{tpu_custom_call.1} parent=1 // pred_check
      _
    $region39: #{tpu_custom_call.1} parent=1 // pred_check_branch
      %643 = sbr.rel (0) target = $region41
    $region40: #{tpu_custom_call.1} parent=1 // pred_region
      %644 = dma.done [#allocation4], 16
    $region41: #{tpu_custom_call.1} parent=1 // pred_fallthru
      _
    %645 = vsyncpa [#allocation3], 1
    %646 = vsyncpa [#allocation6], 1
    %647 = vsyncpa [#allocation4], 1

</llo_original>
